<compile_context>
chip_gen: v7x
topology: tpu7x:2x2x1
jax: 0.10.0
libtpu: 0.0.40
codegen_flags: <defaults>
</compile_context>

<pallas_src>
import functools

import jax
import jax.numpy as jnp
from jax.experimental import pallas as pl
from jax.experimental.pallas import tpu as pltpu


def _round_up(v, m):
    return (v + m - 1) // m * m


def _num_tensorcores():
    """2 TensorCores per chip on v7x; 1 on v5e/v6e. Defensive query."""
    try:
        kind = jax.devices()[0].device_kind.lower()
    except Exception:
        return 1
    if "v7" in kind or "7x" in kind:
        return 2
    return 1


def _resident_spec(shape):
    """VMEM-resident parameter slab: constant index_map, single buffer."""
    try:
        return pl.BlockSpec(shape, lambda i: (0, 0), pipeline_mode=pl.Buffered(1))
    except TypeError:  # older BlockSpec signature without pipeline_mode
        return pl.BlockSpec(shape, lambda i: (0, 0))


# --------------------------------------------------------------------------
# Kernel
# --------------------------------------------------------------------------
def enhanced_lstm_kernel(x_ref, w_ref, b_ref, out_ref, *,
                         h2_pad, in_pad, nc_pad, off_w0, off_w1, off_wfc):
    """Fused 2-layer bi-LSTM (seq_len == 1) + linear head on one batch tile.

    w_ref (bf16) rows: [W0 (in_pad x gw) | W1 (h2_pad x gw) | Wfc (h2_pad x nc_pad)]
    b_ref (f32)  rows: [b0 | b1 | bfc | zero-pad...]
    Gate column layout per layer (128-aligned blocks of width h2_pad):
        [i_f,i_r,0.. | g_f,g_r,0.. | o_f,o_r,0..]
    """
    gw = 3 * h2_pad

    def sig(v):                      # 1 EUP pass instead of exp + reciprocal
        return 0.5 * jnp.tanh(0.5 * v) + 0.5

    def fused_cell(inp_bf16, w_off, w_rows, b_row):
        w = w_ref[pl.ds(w_off, w_rows), :gw]
        b = b_ref[pl.ds(b_row, 1), :gw]
        gates = jnp.dot(inp_bf16, w, preferred_element_type=jnp.float32) + b
        i_blk = sig(gates[:, 0:h2_pad])                    # 128-aligned slices
        g_blk = jnp.tanh(gates[:, h2_pad:2 * h2_pad])
        o_blk = sig(gates[:, 2 * h2_pad:3 * h2_pad])
        # (B_tile, h2_pad) == [h_fwd | h_rev | 0...]; forget gate dropped (c0==0).
        return o_blk * jnp.tanh(i_blk * g_blk)

    x = x_ref[...].astype(jnp.bfloat16)                    # (B_tile, in_pad)

    h0 = fused_cell(x, off_w0, in_pad, 0)                  # layer 0 (both dirs)
    # TODO(synk): inter-layer dropout (p=0.4) omitted — identity in eval mode.
    h1 = fused_cell(h0.astype(jnp.bfloat16), off_w1, h2_pad, 1)   # layer 1
    # TODO(synk): output dropout (p=0.4) omitted — identity in eval mode.

    wfc = w_ref[pl.ds(off_wfc, h2_pad), :nc_pad]
    bfc = b_ref[pl.ds(2, 1), :nc_pad]
    out_ref[...] = (jnp.dot(h1.astype(jnp.bfloat16), wfc,
                            preferred_element_type=jnp.float32)
                    + bfc)                                  # lane-dense (B_tile, 128k)


# --------------------------------------------------------------------------
# Wrapper
# --------------------------------------------------------------------------
def enhanced_lstm_forward(x, weights, biases, meta, num_classes, b_tile_max=1024):
    B, in_feat = x.shape
    in_pad = meta["in_pad"]
    nc_pad = meta["nc_pad"]
    h2_pad = meta["h2_pad"]
    C = meta["C"]
    w_rows = meta["w_rows"]
    gw = 3 * h2_pad

    # Generation-aware batch tiling: split across TCs only where there are 2.
    b_pad = _round_up(B, 8)
    n_tc = _num_tensorcores()
    if n_tc > 1 and b_pad >= 16:
        b_tile = min(b_tile_max, _round_up(-(-b_pad // n_tc), 8))
    else:
        b_tile = min(b_pad, b_tile_max)
    b_pad = _round_up(b_pad, b_tile)
    grid = (b_pad // b_tile,)

    # Pad only when strictly needed (avoids an extra HBM round-trip of x).
    if b_pad == B and in_pad == in_feat and x.dtype == jnp.float32:
        x_p = x
    else:
        x_p = jnp.zeros((b_pad, in_pad), jnp.float32).at[:B, :in_feat].set(x)

    kernel = functools.partial(
        enhanced_lstm_kernel,
        h2_pad=h2_pad, in_pad=in_pad, nc_pad=nc_pad,
        off_w0=meta["off_w0"], off_w1=meta["off_w1"], off_wfc=meta["off_wfc"])

    # Explicit VMEM budget: x/out tiles double-buffered, weight slab single-
    # buffered (bf16), bias slab, plus activation temporaries; 1.5x headroom.
    vmem_bytes = (2 * b_tile * in_pad * 4
                  + w_rows * C * 2
                  + 2 * 8 * C * 4
                  + 2 * b_tile * nc_pad * 4
                  + 8 * b_tile * gw * 4)
    vmem_limit = min(max(int(vmem_bytes * 1.5), 16 << 20), 48 << 20)

    out = pl.pallas_call(
        kernel,
        out_shape=jax.ShapeDtypeStruct((b_pad, nc_pad), jnp.float32),
        grid_spec=pltpu.PrefetchScalarGridSpec(
            num_scalar_prefetch=0,
            grid=grid,
            in_specs=[
                pl.BlockSpec((b_tile, in_pad), lambda i: (i, 0)),   # x tile
                _resident_spec((w_rows, C)),                        # bf16 weights
                _resident_spec((8, C)),                             # f32 biases
            ],
            out_specs=pl.BlockSpec((b_tile, nc_pad), lambda i: (i, 0)),
        ),
        compiler_params=pltpu.CompilerParams(
            dimension_semantics=("parallel",),
            vmem_limit_bytes=vmem_limit),
    )(x_p, weights, biases)

    return out[:B, :num_classes]


# --------------------------------------------------------------------------
# Parameter construction (PyTorch layout) and packing
# --------------------------------------------------------------------------
def init_params(key, input_size, hidden_size, num_classes):
    """Mirror nn.LSTM / nn.Linear shapes.

    PyTorch stores weight_ih_l{k}[_reverse] as (4H, in_features) plus two bias
    vectors (b_ih, b_hh) of shape (4H,). Since seq_len == 1 and h0 == 0 the
    recurrent weights W_hh never contribute, so they are not materialized.
    Weights are stored transposed (in_features, 4H); biases are pre-summed.
    """
    H = hidden_size
    keys = jax.random.split(key, 16)
    k = iter(keys)

    def u(shape, bound, kk):
        return jax.random.uniform(kk, shape, jnp.float32, -bound, bound)

    bound_lstm = 1.0 / jnp.sqrt(H)
    params = {}
    # layer 0: input_size -> H, two directions
    params["w_ih_l0_f"] = u((input_size, 4 * H), bound_lstm, next(k))
    params["b_l0_f"] = (u((1, 4 * H), bound_lstm, next(k))
                        + u((1, 4 * H), bound_lstm, next(k)))
    params["w_ih_l0_r"] = u((input_size, 4 * H), bound_lstm, next(k))
    params["b_l0_r"] = (u((1, 4 * H), bound_lstm, next(k))
                        + u((1, 4 * H), bound_lstm, next(k)))
    # layer 1: 2H -> H, two directions
    params["w_ih_l1_f"] = u((2 * H, 4 * H), bound_lstm, next(k))
    params["b_l1_f"] = (u((1, 4 * H), bound_lstm, next(k))
                        + u((1, 4 * H), bound_lstm, next(k)))
    params["w_ih_l1_r"] = u((2 * H, 4 * H), bound_lstm, next(k))
    params["b_l1_r"] = (u((1, 4 * H), bound_lstm, next(k))
                        + u((1, 4 * H), bound_lstm, next(k)))
    # fc: 2H -> num_classes
    bound_fc = 1.0 / jnp.sqrt(2 * H)
    params["w_fc"] = u((2 * H, num_classes), bound_fc, next(k))
    params["b_fc"] = u((1, num_classes), bound_fc, next(k))
    return params


def pack_params(params, input_size, hidden_size, num_classes):
    """Pack weights (bf16) and biases (f32) with 128-lane-aligned gate blocks."""
    H = hidden_size
    h2 = 2 * H
    h2_pad = _round_up(h2, 128)          # per-gate fused block width (minimal)
    gw = 3 * h2_pad                      # [i | g | o], each 128-aligned
    in_pad = _round_up(input_size, 16)   # 16-row alignment for bf16 sublanes
    nc_pad = _round_up(max(num_classes, 128), 128)
    C = _round_up(max(gw, nc_pad), 128)

    def iog(a):  # drop forget-gate block from PyTorch gate order [i, f, g, o]
        return a[:, 0:H], a[:, 2 * H:3 * H], a[:, 3 * H:4 * H]

    def fuse_pad(a_f, a_r):
        # -> [i_f,i_r,0.. | g_f,g_r,0.. | o_f,o_r,0..], each block h2_pad wide
        i_f, g_f, o_f = iog(a_f)
        i_r, g_r, o_r = iog(a_r)
        rows = a_f.shape[0]
        blk = jnp.zeros((rows, gw), jnp.float32)
        blk = blk.at[:, 0:H].set(i_f).at[:, H:h2].set(i_r)
        blk = blk.at[:, h2_pad:h2_pad + H].set(g_f)
        blk = blk.at[:, h2_pad + H:h2_pad + h2].set(g_r)
        blk = blk.at[:, 2 * h2_pad:2 * h2_pad + H].set(o_f)
        blk = blk.at[:, 2 * h2_pad + H:2 * h2_pad + h2].set(o_r)
        return blk

    def place(block, rows):
        out = jnp.zeros((rows, C), jnp.float32)
        return out.at[:block.shape[0], :block.shape[1]].set(block)

    w0 = place(fuse_pad(params["w_ih_l0_f"], params["w_ih_l0_r"]), in_pad)
    w1 = place(fuse_pad(params["w_ih_l1_f"], params["w_ih_l1_r"]), h2_pad)
    wfc = place(params["w_fc"], h2_pad)
    weights = jnp.concatenate([w0, w1, wfc], axis=0).astype(jnp.bfloat16)

    biases = jnp.zeros((8, C), jnp.float32)
    biases = biases.at[0:1, :gw].set(fuse_pad(params["b_l0_f"], params["b_l0_r"]))
    biases = biases.at[1:2, :gw].set(fuse_pad(params["b_l1_f"], params["b_l1_r"]))
    biases = biases.at[2:3, :num_classes].set(params["b_fc"])

    meta = dict(H=H, h2=h2, h2_pad=h2_pad, in_pad=in_pad, nc_pad=nc_pad, C=C,
                w_rows=weights.shape[0],
                off_w0=0, off_w1=in_pad, off_wfc=in_pad + h2_pad)
    return weights, biases, meta


# --------------------------------------------------------------------------
# Pure-JAX reference (full PyTorch gate math, c0 = 0)
# --------------------------------------------------------------------------
def reference_forward(x, params, quantize=False):
    def q(a):  # mimic the kernel's bf16 matmul operands when quantize=True
        return a.astype(jnp.bfloat16).astype(jnp.float32) if quantize else a

    def cell(inp, w, b):
        g = q(inp) @ q(w) + b
        H = g.shape[-1] // 4
        i = jax.nn.sigmoid(g[:, 0:H])
        f = jax.nn.sigmoid(g[:, H:2 * H])
        gg = jnp.tanh(g[:, 2 * H:3 * H])
        o = jax.nn.sigmoid(g[:, 3 * H:4 * H])
        c1 = f * 0.0 + i * gg          # c0 == 0
        return o * jnp.tanh(c1)

    h0 = jnp.concatenate([cell(x, params["w_ih_l0_f"], params["b_l0_f"]),
                          cell(x, params["w_ih_l0_r"], params["b_l0_r"])], -1)
    h1 = jnp.concatenate([cell(h0, params["w_ih_l1_f"], params["b_l1_f"]),
                          cell(h0, params["w_ih_l1_r"], params["b_l1_r"])], -1)
    return q(h1) @ q(params["w_fc"]) + params["b_fc"]


if __name__ == "__main__":
    input_size, hidden_size, num_classes, batch = 16, 32, 8, 4

    key = jax.random.PRNGKey(0)
    k_x, k_p = jax.random.split(key)
    x = jax.random.normal(k_x, (batch, input_size), jnp.float32)
    params = init_params(k_p, input_size, hidden_size, num_classes)
    weights, biases, meta = pack_params(params, input_size, hidden_size,
                                        num_classes)

    out = enhanced_lstm_forward(x, weights, biases, meta, num_classes)
    out = jax.block_until_ready(out)
    assert out.shape == (batch, num_classes)

    # Tight check vs a reference that uses the same bf16-rounded matmul
    # operands; loose sanity check vs the pure-f32 reference.
    ref_q = reference_forward(x, params, quantize=True)
    ref_f = reference_forward(x, params, quantize=False)
    assert jnp.allclose(out, ref_q, atol=1e-3, rtol=1e-3)
    assert jnp.allclose(out, ref_f, atol=5e-2, rtol=5e-2)

    print("KERNEL_OK")
</pallas_src>

<mosaic_0001>
module attributes {stable_mosaic.version = 11 : i64} {
  func.func @enhanced_lstm_kernel(%arg0: i32, %arg1: memref<8x16xf32, #tpu.memory_space<vmem>>, %arg2: memref<272x384xbf16, #tpu.memory_space<vmem>>, %arg3: memref<8x384xf32, #tpu.memory_space<vmem>>, %arg4: memref<8x128xf32, #tpu.memory_space<vmem>>) attributes {dimension_semantics = [#tpu.dimension_semantics<parallel>], iteration_bounds = array<i64: 1>, scalar_prefetch = 0 : i64, scratch_operands = 0 : i64, tpu.core_type = #tpu.core_type<tc>, window_params = [{transform_indices = @transform_0, window_bounds = array<i64: 8, 16>}, {pipeline_mode = #tpu.pipeline_mode<synchronous>, transform_indices = @transform_1, window_bounds = array<i64: 272, 384>}, {pipeline_mode = #tpu.pipeline_mode<synchronous>, transform_indices = @transform_2, window_bounds = array<i64: 8, 384>}, {transform_indices = @transform_3, window_bounds = array<i64: 8, 128>}]} {
    %c0 = arith.constant 0 : index
    %c0_0 = arith.constant 0 : index
    %0 = vector.load %arg1[%c0, %c0_0] : memref<8x16xf32, #tpu.memory_space<vmem>>, vector<8x16xf32>
    %1 = arith.truncf %0 : vector<8x16xf32> to vector<8x16xbf16>
    %c0_1 = arith.constant 0 : index
    %c0_2 = arith.constant 0 : index
    %2 = vector.load %arg2[%c0_1, %c0_2] : memref<272x384xbf16, #tpu.memory_space<vmem>>, vector<16x384xbf16>
    %c0_3 = arith.constant 0 : index
    %c0_4 = arith.constant 0 : index
    %3 = vector.load %arg3[%c0_3, %c0_4] : memref<8x384xf32, #tpu.memory_space<vmem>>, vector<1x384xf32>
    %cst = arith.constant dense<0.000000e+00> : vector<8x384xf32>
    %4 = tpu.matmul %1, %2, %cst {dimension_numbers = #tpu.dot_dimension_numbers<[1], [0], [0], [1], [0, 0, 1, 1], [], []>} : vector<8x16xbf16>, vector<16x384xbf16>, vector<8x384xf32> -> vector<8x384xf32>
    %5 = vector.broadcast %3 : vector<1x384xf32> to vector<8x384xf32>
    %6 = arith.addf %4, %5 : vector<8x384xf32>
    %7 = vector.extract_strided_slice %6 {offsets = [0, 0], sizes = [8, 128], strides = [1, 1]} : vector<8x384xf32> to vector<8x128xf32>
    %cst_5 = arith.constant 5.000000e-01 : f32
    %8 = vector.broadcast %cst_5 : f32 to vector<8x128xf32>
    %9 = arith.mulf %8, %7 : vector<8x128xf32>
    %10 = math.tanh %9 : vector<8x128xf32>
    %cst_6 = arith.constant 5.000000e-01 : f32
    %11 = vector.broadcast %cst_6 : f32 to vector<8x128xf32>
    %12 = arith.mulf %11, %10 : vector<8x128xf32>
    %cst_7 = arith.constant 5.000000e-01 : f32
    %13 = vector.broadcast %cst_7 : f32 to vector<8x128xf32>
    %14 = arith.addf %12, %13 : vector<8x128xf32>
    %15 = vector.extract_strided_slice %6 {offsets = [0, 128], sizes = [8, 128], strides = [1, 1]} : vector<8x384xf32> to vector<8x128xf32>
    %16 = math.tanh %15 : vector<8x128xf32>
    %17 = vector.extract_strided_slice %6 {offsets = [0, 256], sizes = [8, 128], strides = [1, 1]} : vector<8x384xf32> to vector<8x128xf32>
    %cst_8 = arith.constant 5.000000e-01 : f32
    %18 = vector.broadcast %cst_8 : f32 to vector<8x128xf32>
    %19 = arith.mulf %18, %17 : vector<8x128xf32>
    %20 = math.tanh %19 : vector<8x128xf32>
    %cst_9 = arith.constant 5.000000e-01 : f32
    %21 = vector.broadcast %cst_9 : f32 to vector<8x128xf32>
    %22 = arith.mulf %21, %20 : vector<8x128xf32>
    %cst_10 = arith.constant 5.000000e-01 : f32
    %23 = vector.broadcast %cst_10 : f32 to vector<8x128xf32>
    %24 = arith.addf %22, %23 : vector<8x128xf32>
    %25 = arith.mulf %14, %16 : vector<8x128xf32>
    %26 = math.tanh %25 : vector<8x128xf32>
    %27 = arith.mulf %24, %26 : vector<8x128xf32>
    %28 = arith.truncf %27 : vector<8x128xf32> to vector<8x128xbf16>
    %c16 = arith.constant 16 : index
    %c0_11 = arith.constant 0 : index
    %29 = vector.load %arg2[%c16, %c0_11] : memref<272x384xbf16, #tpu.memory_space<vmem>>, vector<128x384xbf16>
    %c1 = arith.constant 1 : index
    %c0_12 = arith.constant 0 : index
    %30 = vector.load %arg3[%c1, %c0_12] : memref<8x384xf32, #tpu.memory_space<vmem>>, vector<1x384xf32>
    %cst_13 = arith.constant dense<0.000000e+00> : vector<8x384xf32>
    %31 = tpu.matmul %28, %29, %cst_13 {dimension_numbers = #tpu.dot_dimension_numbers<[1], [0], [0], [1], [0, 0, 1, 1], [], []>} : vector<8x128xbf16>, vector<128x384xbf16>, vector<8x384xf32> -> vector<8x384xf32>
    %32 = vector.broadcast %30 : vector<1x384xf32> to vector<8x384xf32>
    %33 = arith.addf %31, %32 : vector<8x384xf32>
    %34 = vector.extract_strided_slice %33 {offsets = [0, 0], sizes = [8, 128], strides = [1, 1]} : vector<8x384xf32> to vector<8x128xf32>
    %cst_14 = arith.constant 5.000000e-01 : f32
    %35 = vector.broadcast %cst_14 : f32 to vector<8x128xf32>
    %36 = arith.mulf %35, %34 : vector<8x128xf32>
    %37 = math.tanh %36 : vector<8x128xf32>
    %cst_15 = arith.constant 5.000000e-01 : f32
    %38 = vector.broadcast %cst_15 : f32 to vector<8x128xf32>
    %39 = arith.mulf %38, %37 : vector<8x128xf32>
    %cst_16 = arith.constant 5.000000e-01 : f32
    %40 = vector.broadcast %cst_16 : f32 to vector<8x128xf32>
    %41 = arith.addf %39, %40 : vector<8x128xf32>
    %42 = vector.extract_strided_slice %33 {offsets = [0, 128], sizes = [8, 128], strides = [1, 1]} : vector<8x384xf32> to vector<8x128xf32>
    %43 = math.tanh %42 : vector<8x128xf32>
    %44 = vector.extract_strided_slice %33 {offsets = [0, 256], sizes = [8, 128], strides = [1, 1]} : vector<8x384xf32> to vector<8x128xf32>
    %cst_17 = arith.constant 5.000000e-01 : f32
    %45 = vector.broadcast %cst_17 : f32 to vector<8x128xf32>
    %46 = arith.mulf %45, %44 : vector<8x128xf32>
    %47 = math.tanh %46 : vector<8x128xf32>
    %cst_18 = arith.constant 5.000000e-01 : f32
    %48 = vector.broadcast %cst_18 : f32 to vector<8x128xf32>
    %49 = arith.mulf %48, %47 : vector<8x128xf32>
    %cst_19 = arith.constant 5.000000e-01 : f32
    %50 = vector.broadcast %cst_19 : f32 to vector<8x128xf32>
    %51 = arith.addf %49, %50 : vector<8x128xf32>
    %52 = arith.mulf %41, %43 : vector<8x128xf32>
    %53 = math.tanh %52 : vector<8x128xf32>
    %54 = arith.mulf %51, %53 : vector<8x128xf32>
    %c144 = arith.constant 144 : index
    %c0_20 = arith.constant 0 : index
    %55 = vector.load %arg2[%c144, %c0_20] : memref<272x384xbf16, #tpu.memory_space<vmem>>, vector<128x128xbf16>
    %c2 = arith.constant 2 : index
    %c0_21 = arith.constant 0 : index
    %56 = vector.load %arg3[%c2, %c0_21] : memref<8x384xf32, #tpu.memory_space<vmem>>, vector<1x128xf32>
    %57 = arith.truncf %54 : vector<8x128xf32> to vector<8x128xbf16>
    %cst_22 = arith.constant dense<0.000000e+00> : vector<8x128xf32>
    %58 = tpu.matmul %57, %55, %cst_22 {dimension_numbers = #tpu.dot_dimension_numbers<[1], [0], [0], [1], [0, 0, 1, 1], [], []>} : vector<8x128xbf16>, vector<128x128xbf16>, vector<8x128xf32> -> vector<8x128xf32>
    %59 = vector.broadcast %56 : vector<1x128xf32> to vector<8x128xf32>
    %60 = arith.addf %58, %59 : vector<8x128xf32>
    %c0_23 = arith.constant 0 : index
    %c0_24 = arith.constant 0 : index
    %61 = vector.load %arg4[%c0_23, %c0_24] : memref<8x128xf32, #tpu.memory_space<vmem>>, vector<8x128xf32>
    tpu.vector_store %arg4[%c0_23, %c0_24], %60 {strides = array<i32>} : memref<8x128xf32, #tpu.memory_space<vmem>>, vector<8x128xf32>,
    return
  }
  func.func @transform_0(%arg0: i32) -> (i32, i32) {
    %c0_i32 = arith.constant 0 : i32
    %c0_i32_0 = arith.constant 0 : i32
    return %arg0, %c0_i32 : i32, i32
  }
  func.func @transform_1(%arg0: i32) -> (i32, i32) {
    %c0_i32 = arith.constant 0 : i32
    %c0_i32_0 = arith.constant 0 : i32
    %c0_i32_1 = arith.constant 0 : i32
    return %c0_i32, %c0_i32_0 : i32, i32
  }
  func.func @transform_2(%arg0: i32) -> (i32, i32) {
    %c0_i32 = arith.constant 0 : i32
    %c0_i32_0 = arith.constant 0 : i32
    %c0_i32_1 = arith.constant 0 : i32
    return %c0_i32, %c0_i32_0 : i32, i32
  }
  func.func @transform_3(%arg0: i32) -> (i32, i32) {
    %c0_i32 = arith.constant 0 : i32
    %c0_i32_0 = arith.constant 0 : i32
    return %arg0, %c0_i32 : i32, i32
  }
}

</mosaic_0001>

<llo_original>
// kernel: tpu_custom_call.1
$region0: #{tpu_custom_call.1}
  #allocation0 [shape = 'u32[]', space=smem, size = 0x4, offset = 0x4, fixed_abs, tag = 'smem constant byte address 0x4 - core index']
  #allocation1 [shape = 'u32[144,128]{1,0:T(1,128)}', space=vmem, size = 0x12000, scoped, tag = 'internal scratch']
  %s0 = inlined_call_operand.hbm [shape: f32[8,16], index: 0, kind: input, shape index: {}]
  %s1 = inlined_call_operand.hbm [shape: bf16[272,384], index: 1, kind: input, shape index: {}]
  %s2 = inlined_call_operand.hbm [shape: f32[8,384], index: 2, kind: input, shape index: {}]
  %s3 = inlined_call_operand.hbm [shape: f32[8,128], index: 3, kind: output, shape index: {}]
  %s4 = sld [smem:[#allocation0]]
  $region34: #{tpu_custom_call.1} parent=0
    _
  %s6 = ssub.s32 1, %s4
  %s7 = scalar_select 0, %s6, %s4
  $region1: #{tpu_custom_call.1} parent=0
    #allocation2 [shape = 'u8[4096]{0}', space=vmem, size = 0x1000, scoped, tag = 'input window, operand 0, single buffered']
    #allocation3 [shape = 's32[1]{0}', space=sflag, size = 0x4, scoped, tag = 'scoped memory for tpu_custom_call.1']
    #allocation4 [shape = 's32[1]{0}', space=sflag, size = 0x4, scoped, tag = 'scoped memory for tpu_custom_call.1']
    #allocation5 [shape = 'u8[208896]{0}', space=vmem, size = 0x33000, scoped, tag = 'input window, operand 1, single buffered']
    #allocation6 [shape = 's32[1]{0}', space=sflag, size = 0x4, scoped, tag = 'scoped memory for tpu_custom_call.1']
    #allocation7 [shape = 'u8[12288]{0}', space=vmem, size = 0x3000, scoped, tag = 'input window, operand 2, single buffered']
    #allocation8 [shape = 'u8[4096]{0}', space=vmem, size = 0x1000, scoped, tag = 'output window, operand 0, single buffered']
    %8 = vsyncpa [#allocation3], 0
    %9 = vsyncpa [#allocation6], 0
    %10 = vsyncpa [#allocation4], 0
    // Predicated region
    $region2: #{tpu_custom_call.1} parent=1 // pred_check
      _
    $region3: #{tpu_custom_call.1} parent=1 // pred_check_branch
      %12 = sbr.rel (0) target = $region5
    $region4: #{tpu_custom_call.1} parent=1 // pred_region
      %s14 = ssub.s32 128, 128
      %15 = vsyncadd [#allocation3], %s14
      %s17 = sshll.u32 [#allocation2], 4
      %s18 = int_to_ptr.vmem [resolvable:$true] %s17
      %20 = dma.hbm_to_vmem [thread:$0]  %s0, 128, %s18, [#allocation3]
    $region5: #{tpu_custom_call.1} parent=1 // pred_fallthru
      _
    // Predicated region
    $region6: #{tpu_custom_call.1} parent=1 // pred_check
      _
    $region7: #{tpu_custom_call.1} parent=1 // pred_check_branch
      %22 = sbr.rel (0) target = $region9
    $region8: #{tpu_custom_call.1} parent=1 // pred_region
      %s24 = ssub.s32 6528, 6528
      %25 = vsyncadd [#allocation6], %s24
      %s26 = sshll.u32 [#allocation5], 4
      %s27 = int_to_ptr.vmem [resolvable:$true] %s26
      %32 = dma.hbm_to_vmem [thread:$0]  %s1, 6528, %s27, [#allocation6], 192, 192, 12
    $region9: #{tpu_custom_call.1} parent=1 // pred_fallthru
      _
    // Predicated region
    $region10: #{tpu_custom_call.1} parent=1 // pred_check
      _
    $region11: #{tpu_custom_call.1} parent=1 // pred_check_branch
      %34 = sbr.rel (0) target = $region13
    $region12: #{tpu_custom_call.1} parent=1 // pred_region
      %s36 = ssub.s32 384, 384
      %37 = vsyncadd [#allocation6], %s36
      %s39 = sshll.u32 [#allocation7], 4
      %s40 = int_to_ptr.vmem [resolvable:$true] %s39
      %42 = dma.hbm_to_vmem [thread:$0]  %s2, 384, %s40, [#allocation6]
    $region13: #{tpu_custom_call.1} parent=1 // pred_fallthru
      _
    // Predicated region
    $region14: #{tpu_custom_call.1} parent=1 // pred_check
      _
    $region15: #{tpu_custom_call.1} parent=1 // pred_check_branch
      %44 = sbr.rel (0) target = $region17
    $region16: #{tpu_custom_call.1} parent=1 // pred_region
      %45 = dma.done [#allocation3], 128
    $region17: #{tpu_custom_call.1} parent=1 // pred_fallthru
      _
    // Predicated region
    $region18: #{tpu_custom_call.1} parent=1 // pred_check
      _
    $region19: #{tpu_custom_call.1} parent=1 // pred_check_branch
      %47 = sbr.rel (0) target = $region21
    $region20: #{tpu_custom_call.1} parent=1 // pred_region
      %48 = dma.done [#allocation6], 6528
    $region21: #{tpu_custom_call.1} parent=1 // pred_fallthru
      _
    // Predicated region
    $region22: #{tpu_custom_call.1} parent=1 // pred_check
      _
    $region23: #{tpu_custom_call.1} parent=1 // pred_check_branch
      %50 = sbr.rel (0) target = $region25
    $region24: #{tpu_custom_call.1} parent=1 // pred_region
      %51 = dma.done [#allocation6], 384
    $region25: #{tpu_custom_call.1} parent=1 // pred_fallthru
      _
    %v53 = vld [vmem:[#allocation2] sm:$0xff]
    %v54 = vpack.c.bf16 %v53, %v53
    %v55 = vld [vmem:[#allocation5] sm:$0xff]
    %v56 = vld [vmem:[#allocation5 + $0x8] sm:$0xf]
    %v57 = vld [vmem:[#allocation5 + $0xc] sm:$0xff]
    %v58 = vld [vmem:[#allocation5 + $0x14] sm:$0xf]
    %v59 = vld [vmem:[#allocation7] ss:$8 sm:$0x7]
    %v61 = vlaneseq
    %v62 = vshrl.u32 %v61, 7
    %v63 = vsub.s32 0, %v62
    %v64 = vrot.slane %v59, %v63
    %v65 = vlaneseq
    %v66 = vshrl.u32 %v65, 7
    %v67 = vsub.s32 1, %v66
    %v68 = vrot.slane %v59, %v67
    %v69 = vlaneseq
    %v70 = vshrl.u32 %v69, 7
    %v71 = vsub.s32 2, %v70
    %v72 = vrot.slane %v59, %v71
    %v80 = vunpack.c.l.b16 %v55
    %v81 = vunpack.c.h.b16 %v55
    %v82 = vunpack.c.l.b16 %v56
    %v83 = vunpack.c.l.b16 %v57
    %v84 = vunpack.c.h.b16 %v57
    %v85 = vunpack.c.l.b16 %v58
    %v86 = vpack.c.b16 %v83, %v80
    %v87 = vpack.c.b16 %v84, %v81
    %v88 = vpack.c.b16 %v85, %v82
    %vm92 = vcmask 130048
    %v94 = vsel %vm92, %v54, 0
    %96 = vmatprep.subr.bf16.mxu0 %v87
    %97 = vmatpush1.bf16.msra.mxu0 %v86
    %98 = vmatprep.subr.bf16.mxu0 0
    %99 = vmatpush1.bf16.msra.mxu0 0
    %100 = vmatprep.subr.bf16.mxu0 0
    %101 = vmatpush1.bf16.msra.mxu0 0
    %102 = vmatprep.subr.bf16.mxu0 0
    %103 = vmatpush1.bf16.msra.mxu0 0
    %104 = vmatprep.subr.bf16.mxu0 0
    %105 = vmatpush1.bf16.msra.mxu0 0
    %106 = vmatprep.subr.bf16.mxu0 0
    %107 = vmatpush1.bf16.msra.mxu0 0
    %108 = vmatprep.subr.bf16.mxu0 0
    %109 = vmatpush1.bf16.msra.mxu0 0
    %110 = vmatprep.subr.bf16.mxu0 0
    %111 = vmatpush1.bf16.msra.mxu0 0
    %112 = vmatprep.subr.bf16.mxu0 0
    %113 = vmatpush1.bf16.msra.mxu0 0
    %114 = vmatprep.subr.bf16.mxu0 0
    %115 = vmatpush1.bf16.msra.mxu0 0
    %116 = vmatprep.subr.bf16.mxu0 0
    %117 = vmatpush1.bf16.msra.mxu0 0
    %118 = vmatprep.subr.bf16.mxu0 0
    %119 = vmatpush1.bf16.msra.mxu0 0
    %120 = vmatprep.subr.bf16.mxu0 0
    %121 = vmatpush1.bf16.msra.mxu0 0
    %122 = vmatprep.subr.bf16.mxu0 0
    %123 = vmatpush1.bf16.msra.mxu0 0
    %124 = vmatprep.subr.bf16.mxu0 0
    %125 = vmatpush1.bf16.msra.mxu0 0
    %126 = vmatprep.subr.bf16.mxu0 0
    %127 = vmatpush1.bf16.msra.mxu0 0
    %128 = vmatprep.mubr.bf16.mxu0 0
    %129 = vmatmul.mubr.bf16.gmra.mrb[0].mxu0 %v94
    %v130 = vpop.f32.mrb[0].mxu0
    %v131 = vadd.f32 %v64, %v130
    %v132 = vpop.f32.mrb[0].mxu0
    %v133 = vadd.f32 %v68, %v132
    %v134 = vpop.f32.mrb[0].mxu0
    %v135 = vpop.f32.mrb[0].mxu0
    %136 = vdwg.mxu0
    %137 = vmatprep.subr.bf16.mxu0 0
    %138 = vmatpush1.bf16.msra.mxu0 %v88
    %139 = vmatprep.subr.bf16.mxu0 0
    %140 = vmatpush1.bf16.msra.mxu0 0
    %141 = vmatprep.subr.bf16.mxu0 0
    %142 = vmatpush1.bf16.msra.mxu0 0
    %143 = vmatprep.subr.bf16.mxu0 0
    %144 = vmatpush1.bf16.msra.mxu0 0
    %145 = vmatprep.subr.bf16.mxu0 0
    %146 = vmatpush1.bf16.msra.mxu0 0
    %147 = vmatprep.subr.bf16.mxu0 0
    %148 = vmatpush1.bf16.msra.mxu0 0
    %149 = vmatprep.subr.bf16.mxu0 0
    %150 = vmatpush1.bf16.msra.mxu0 0
    %151 = vmatprep.subr.bf16.mxu0 0
    %152 = vmatpush1.bf16.msra.mxu0 0
    %153 = vmatprep.subr.bf16.mxu0 0
    %154 = vmatpush1.bf16.msra.mxu0 0
    %155 = vmatprep.subr.bf16.mxu0 0
    %156 = vmatpush1.bf16.msra.mxu0 0
    %157 = vmatprep.subr.bf16.mxu0 0
    %158 = vmatpush1.bf16.msra.mxu0 0
    %159 = vmatprep.subr.bf16.mxu0 0
    %160 = vmatpush1.bf16.msra.mxu0 0
    %161 = vmatprep.subr.bf16.mxu0 0
    %162 = vmatpush1.bf16.msra.mxu0 0
    %163 = vmatprep.subr.bf16.mxu0 0
    %164 = vmatpush1.bf16.msra.mxu0 0
    %165 = vmatprep.subr.bf16.mxu0 0
    %166 = vmatpush1.bf16.msra.mxu0 0
    %167 = vmatprep.subr.bf16.mxu0 0
    %168 = vmatpush1.bf16.msra.mxu0 0
    %169 = vmatprep.mubr.bf16.mxu0 0
    %170 = vmatmul.mubr.bf16.gmra.mrb[0].mxu0 %v94
    %v171 = vpop.f32.mrb[0].mxu0
    %v172 = vadd.f32 %v72, %v171
    %v173 = vpop.f32.mrb[0].mxu0
    %v174 = vpop.f32.mrb[0].mxu0
    %v175 = vpop.f32.mrb[0].mxu0
    %176 = vdwg.mxu0
    %v177 = vmul.f32 %v131, 0.5
    %v178 = vtanh.pop %v177
    %v179 = vmul.f32 %v178, 0.5
    %v180 = vadd.f32 %v179, 0.5
    %v181 = vtanh.pop %v133
    %v182 = vmul.f32 %v172, 0.5
    %v183 = vtanh.pop %v182
    %v184 = vmul.f32 %v183, 0.5
    %v185 = vadd.f32 %v184, 0.5
    %v186 = vmul.f32 %v180, %v181
    %v187 = vtanh.pop %v186
    %v188 = vmul.f32 %v185, %v187
    %v189 = vpack.c.bf16 %v188, %v188
    %v190 = vld [vmem:[#allocation5 + $0x18] sm:$0xff]
    %v191 = vld [vmem:[#allocation5 + $0x20] sm:$0xf]
    %v192 = vld [vmem:[#allocation5 + $0x24] sm:$0xff]
    %v193 = vld [vmem:[#allocation5 + $0x2c] sm:$0xf]
    %v194 = vld [vmem:[#allocation5 + $0x30] sm:$0xff]
    %v195 = vld [vmem:[#allocation5 + $0x38] sm:$0xf]
    %v196 = vld [vmem:[#allocation5 + $0x3c] sm:$0xff]
    %v197 = vld [vmem:[#allocation5 + $0x44] sm:$0xf]
    %v198 = vld [vmem:[#allocation5 + $0x48] sm:$0xff]
    %v199 = vld [vmem:[#allocation5 + $0x50] sm:$0xf]
    %v200 = vld [vmem:[#allocation5 + $0x54] sm:$0xff]
    %v201 = vld [vmem:[#allocation5 + $0x5c] sm:$0xf]
    %v202 = vld [vmem:[#allocation5 + $0x60] sm:$0xff]
    %v203 = vld [vmem:[#allocation5 + $0x68] sm:$0xf]
    %v204 = vld [vmem:[#allocation5 + $0x6c] sm:$0xff]
    %v205 = vld [vmem:[#allocation5 + $0x74] sm:$0xf]
    %v206 = vld [vmem:[#allocation5 + $0x78] sm:$0xff]
    %v207 = vld [vmem:[#allocation5 + $0x80] sm:$0xf]
    %v208 = vld [vmem:[#allocation5 + $0x84] sm:$0xff]
    %v209 = vld [vmem:[#allocation5 + $0x8c] sm:$0xf]
    %v210 = vld [vmem:[#allocation5 + $0x90] sm:$0xff]
    %v211 = vld [vmem:[#allocation5 + $0x98] sm:$0xf]
    %v212 = vld [vmem:[#allocation5 + $0x9c] sm:$0xff]
    %v213 = vld [vmem:[#allocation5 + $0xa4] sm:$0xf]
    %v214 = vld [vmem:[#allocation5 + $0xa8] sm:$0xff]
    %v215 = vld [vmem:[#allocation5 + $0xb0] sm:$0xf]
    %v216 = vld [vmem:[#allocation5 + $0xb4] sm:$0xff]
    %v217 = vld [vmem:[#allocation5 + $0xbc] sm:$0xf]
    %v218 = vld [vmem:[#allocation5 + $0xc0] sm:$0xff]
    %v219 = vld [vmem:[#allocation5 + $0xc8] sm:$0xf]
    %v220 = vld [vmem:[#allocation5 + $0xcc] sm:$0xff]
    %v221 = vld [vmem:[#allocation5 + $0xd4] sm:$0xf]
    %s222 = scalar_lea.vmem [#allocation7], 1
    %v223 = vld [vmem:[%s222] ss:$8 sm:$0x7]
    %v225 = vlaneseq
    %v226 = vshrl.u32 %v225, 7
    %v227 = vsub.s32 0, %v226
    %v228 = vrot.slane %v223, %v227
    %v229 = vlaneseq
    %v230 = vshrl.u32 %v229, 7
    %v231 = vsub.s32 1, %v230
    %v232 = vrot.slane %v223, %v231
    %v233 = vlaneseq
    %v234 = vshrl.u32 %v233, 7
    %v235 = vsub.s32 2, %v234
    %v236 = vrot.slane %v223, %v235
    %v272 = vunpack.c.l.b16 %v190
    %v273 = vunpack.c.h.b16 %v190
    %v274 = vunpack.c.l.b16 %v191
    %v275 = vunpack.c.l.b16 %v192
    %v276 = vunpack.c.h.b16 %v192
    %v277 = vunpack.c.l.b16 %v193
    %v278 = vunpack.c.l.b16 %v194
    %v279 = vunpack.c.h.b16 %v194
    %v280 = vunpack.c.l.b16 %v195
    %v281 = vunpack.c.l.b16 %v196
    %v282 = vunpack.c.h.b16 %v196
    %v283 = vunpack.c.l.b16 %v197
    %v284 = vunpack.c.l.b16 %v198
    %v285 = vunpack.c.h.b16 %v198
    %v286 = vunpack.c.l.b16 %v199
    %v287 = vunpack.c.l.b16 %v200
    %v288 = vunpack.c.h.b16 %v200
    %v289 = vunpack.c.l.b16 %v201
    %v290 = vunpack.c.l.b16 %v202
    %v291 = vunpack.c.h.b16 %v202
    %v292 = vunpack.c.l.b16 %v203
    %v293 = vunpack.c.l.b16 %v204
    %v294 = vunpack.c.h.b16 %v204
    %v295 = vunpack.c.l.b16 %v205
    %v296 = vunpack.c.l.b16 %v206
    %v297 = vunpack.c.h.b16 %v206
    %v298 = vunpack.c.l.b16 %v207
    %v299 = vunpack.c.l.b16 %v208
    %v300 = vunpack.c.h.b16 %v208
    %v301 = vunpack.c.l.b16 %v209
    %v302 = vunpack.c.l.b16 %v210
    %v303 = vunpack.c.h.b16 %v210
    %v304 = vunpack.c.l.b16 %v211
    %v305 = vunpack.c.l.b16 %v212
    %v306 = vunpack.c.h.b16 %v212
    %v307 = vunpack.c.l.b16 %v213
    %v308 = vunpack.c.l.b16 %v214
    %v309 = vunpack.c.h.b16 %v214
    %v310 = vunpack.c.l.b16 %v215
    %v311 = vunpack.c.l.b16 %v216
    %v312 = vunpack.c.h.b16 %v216
    %v313 = vunpack.c.l.b16 %v217
    %v314 = vunpack.c.l.b16 %v218
    %v315 = vunpack.c.h.b16 %v218
    %v316 = vunpack.c.l.b16 %v219
    %v317 = vunpack.c.l.b16 %v220
    %v318 = vunpack.c.h.b16 %v220
    %v319 = vunpack.c.l.b16 %v221
    %v320 = vpack.c.b16 %v275, %v272
    %v321 = vpack.c.b16 %v276, %v273
    %v322 = vpack.c.b16 %v277, %v274
    %v323 = vpack.c.b16 %v281, %v278
    %v324 = vpack.c.b16 %v282, %v279
    %v325 = vpack.c.b16 %v283, %v280
    %v326 = vpack.c.b16 %v287, %v284
    %v327 = vpack.c.b16 %v288, %v285
    %v328 = vpack.c.b16 %v289, %v286
    %v329 = vpack.c.b16 %v293, %v290
    %v330 = vpack.c.b16 %v294, %v291
    %v331 = vpack.c.b16 %v295, %v292
    %v332 = vpack.c.b16 %v299, %v296
    %v333 = vpack.c.b16 %v300, %v297
    %v334 = vpack.c.b16 %v301, %v298
    %v335 = vpack.c.b16 %v305, %v302
    %v336 = vpack.c.b16 %v306, %v303
    %v337 = vpack.c.b16 %v307, %v304
    %v338 = vpack.c.b16 %v311, %v308
    %v339 = vpack.c.b16 %v312, %v309
    %v340 = vpack.c.b16 %v313, %v310
    %v341 = vpack.c.b16 %v317, %v314
    %v342 = vpack.c.b16 %v318, %v315
    %v343 = vpack.c.b16 %v319, %v316
    %368 = vmatprep.subr.bf16.mxu0 %v321
    %369 = vmatpush1.bf16.msra.mxu0 %v320
    %370 = vmatprep.subr.bf16.mxu0 %v324
    %371 = vmatpush1.bf16.msra.mxu0 %v323
    %372 = vmatprep.subr.bf16.mxu0 %v327
    %373 = vmatpush1.bf16.msra.mxu0 %v326
    %374 = vmatprep.subr.bf16.mxu0 %v330
    %375 = vmatpush1.bf16.msra.mxu0 %v329
    %376 = vmatprep.subr.bf16.mxu0 %v333
    %377 = vmatpush1.bf16.msra.mxu0 %v332
    %378 = vmatprep.subr.bf16.mxu0 %v336
    %379 = vmatpush1.bf16.msra.mxu0 %v335
    %380 = vmatprep.subr.bf16.mxu0 %v339
    %381 = vmatpush1.bf16.msra.mxu0 %v338
    %382 = vmatprep.subr.bf16.mxu0 %v342
    %383 = vmatpush1.bf16.msra.mxu0 %v341
    %384 = vmatprep.subr.bf16.mxu0 0
    %385 = vmatpush1.bf16.msra.mxu0 0
    %386 = vmatprep.subr.bf16.mxu0 0
    %387 = vmatpush1.bf16.msra.mxu0 0
    %388 = vmatprep.subr.bf16.mxu0 0
    %389 = vmatpush1.bf16.msra.mxu0 0
    %390 = vmatprep.subr.bf16.mxu0 0
    %391 = vmatpush1.bf16.msra.mxu0 0
    %392 = vmatprep.subr.bf16.mxu0 0
    %393 = vmatpush1.bf16.msra.mxu0 0
    %394 = vmatprep.subr.bf16.mxu0 0
    %395 = vmatpush1.bf16.msra.mxu0 0
    %396 = vmatprep.subr.bf16.mxu0 0
    %397 = vmatpush1.bf16.msra.mxu0 0
    %398 = vmatprep.subr.bf16.mxu0 0
    %399 = vmatpush1.bf16.msra.mxu0 0
    %400 = vmatprep.mubr.bf16.mxu0 0
    %401 = vmatmul.mubr.bf16.gmra.mrb[0].mxu0 %v189
    %v402 = vpop.f32.mrb[0].mxu0
    %v403 = vadd.f32 %v228, %v402
    %v404 = vpop.f32.mrb[0].mxu0
    %v405 = vadd.f32 %v232, %v404
    %v406 = vpop.f32.mrb[0].mxu0
    %v407 = vpop.f32.mrb[0].mxu0
    %408 = vdwg.mxu0
    %409 = vmatprep.subr.bf16.mxu0 0
    %410 = vmatpush1.bf16.msra.mxu0 %v322
    %411 = vmatprep.subr.bf16.mxu0 0
    %412 = vmatpush1.bf16.msra.mxu0 %v325
    %413 = vmatprep.subr.bf16.mxu0 0
    %414 = vmatpush1.bf16.msra.mxu0 %v328
    %415 = vmatprep.subr.bf16.mxu0 0
    %416 = vmatpush1.bf16.msra.mxu0 %v331
    %417 = vmatprep.subr.bf16.mxu0 0
    %418 = vmatpush1.bf16.msra.mxu0 %v334
    %419 = vmatprep.subr.bf16.mxu0 0
    %420 = vmatpush1.bf16.msra.mxu0 %v337
    %421 = vmatprep.subr.bf16.mxu0 0
    %422 = vmatpush1.bf16.msra.mxu0 %v340
    %423 = vmatprep.subr.bf16.mxu0 0
    %424 = vmatpush1.bf16.msra.mxu0 %v343
    %425 = vmatprep.subr.bf16.mxu0 0
    %426 = vmatpush1.bf16.msra.mxu0 0
    %427 = vmatprep.subr.bf16.mxu0 0
    %428 = vmatpush1.bf16.msra.mxu0 0
    %429 = vmatprep.subr.bf16.mxu0 0
    %430 = vmatpush1.bf16.msra.mxu0 0
    %431 = vmatprep.subr.bf16.mxu0 0
    %432 = vmatpush1.bf16.msra.mxu0 0
    %433 = vmatprep.subr.bf16.mxu0 0
    %434 = vmatpush1.bf16.msra.mxu0 0
    %435 = vmatprep.subr.bf16.mxu0 0
    %436 = vmatpush1.bf16.msra.mxu0 0
    %437 = vmatprep.subr.bf16.mxu0 0
    %438 = vmatpush1.bf16.msra.mxu0 0
    %439 = vmatprep.subr.bf16.mxu0 0
    %440 = vmatpush1.bf16.msra.mxu0 0
    %441 = vmatprep.mubr.bf16.mxu0 0
    %442 = vmatmul.mubr.bf16.gmra.mrb[0].mxu0 %v189
    %v443 = vpop.f32.mrb[0].mxu0
    %v444 = vadd.f32 %v236, %v443
    %v445 = vpop.f32.mrb[0].mxu0
    %v446 = vpop.f32.mrb[0].mxu0
    %v447 = vpop.f32.mrb[0].mxu0
    %448 = vdwg.mxu0
    %v449 = vmul.f32 %v403, 0.5
    %v450 = vtanh.pop %v449
    %v451 = vmul.f32 %v450, 0.5
    %v452 = vadd.f32 %v451, 0.5
    %v453 = vtanh.pop %v405
    %v454 = vmul.f32 %v444, 0.5
    %v455 = vtanh.pop %v454
    %v456 = vmul.f32 %v455, 0.5
    %v457 = vadd.f32 %v456, 0.5
    %v458 = vmul.f32 %v452, %v453
    %v459 = vtanh.pop %v458
    %v460 = vmul.f32 %v457, %v459
    %v461 = vld [vmem:[#allocation5 + $0xd8] sm:$0xf]
    %v462 = vld [vmem:[#allocation5 + $0xe4] sm:$0xf]
    %v463 = vld [vmem:[#allocation5 + $0xf0] sm:$0xf]
    %v464 = vld [vmem:[#allocation5 + $0xfc] sm:$0xf]
    %v465 = vld [vmem:[#allocation5 + $0x108] sm:$0xf]
    %v466 = vld [vmem:[#allocation5 + $0x114] sm:$0xf]
    %v467 = vld [vmem:[#allocation5 + $0x120] sm:$0xf]
    %v468 = vld [vmem:[#allocation5 + $0x12c] sm:$0xf]
    %v469 = vld [vmem:[#allocation5 + $0x138] sm:$0xf]
    %v470 = vld [vmem:[#allocation5 + $0x144] sm:$0xf]
    %v471 = vld [vmem:[#allocation5 + $0x150] sm:$0xf]
    %v472 = vld [vmem:[#allocation5 + $0x15c] sm:$0xf]
    %v473 = vld [vmem:[#allocation5 + $0x168] sm:$0xf]
    %v474 = vld [vmem:[#allocation5 + $0x174] sm:$0xf]
    %v475 = vld [vmem:[#allocation5 + $0x180] sm:$0xf]
    %v476 = vld [vmem:[#allocation5 + $0x18c] sm:$0xf]
    %v477 = vld [vmem:[#allocation7 + $0x2] ss:$0 sm:$0xff]
    %v478 = vpack.c.bf16 %v460, %v460
    %v495 = vunpack.c.l.b16 %v461
    %v496 = vunpack.c.l.b16 %v462
    %v497 = vunpack.c.l.b16 %v463
    %v498 = vunpack.c.l.b16 %v464
    %v499 = vunpack.c.l.b16 %v465
    %v500 = vunpack.c.l.b16 %v466
    %v501 = vunpack.c.l.b16 %v467
    %v502 = vunpack.c.l.b16 %v468
    %v503 = vunpack.c.l.b16 %v469
    %v504 = vunpack.c.l.b16 %v470
    %v505 = vunpack.c.l.b16 %v471
    %v506 = vunpack.c.l.b16 %v472
    %v507 = vunpack.c.l.b16 %v473
    %v508 = vunpack.c.l.b16 %v474
    %v509 = vunpack.c.l.b16 %v475
    %v510 = vunpack.c.l.b16 %v476
    %v511 = vpack.c.b16 %v496, %v495
    %v512 = vpack.c.b16 %v498, %v497
    %v513 = vpack.c.b16 %v500, %v499
    %v514 = vpack.c.b16 %v502, %v501
    %v515 = vpack.c.b16 %v504, %v503
    %v516 = vpack.c.b16 %v506, %v505
    %v517 = vpack.c.b16 %v508, %v507
    %v518 = vpack.c.b16 %v510, %v509
    %527 = vmatprep.subr.bf16.mxu0 0
    %528 = vmatpush1.bf16.msra.mxu0 %v511
    %529 = vmatprep.subr.bf16.mxu0 0
    %530 = vmatpush1.bf16.msra.mxu0 %v512
    %531 = vmatprep.subr.bf16.mxu0 0
    %532 = vmatpush1.bf16.msra.mxu0 %v513
    %533 = vmatprep.subr.bf16.mxu0 0
    %534 = vmatpush1.bf16.msra.mxu0 %v514
    %535 = vmatprep.subr.bf16.mxu0 0
    %536 = vmatpush1.bf16.msra.mxu0 %v515
    %537 = vmatprep.subr.bf16.mxu0 0
    %538 = vmatpush1.bf16.msra.mxu0 %v516
    %539 = vmatprep.subr.bf16.mxu0 0
    %540 = vmatpush1.bf16.msra.mxu0 %v517
    %541 = vmatprep.subr.bf16.mxu0 0
    %542 = vmatpush1.bf16.msra.mxu0 %v518
    %543 = vmatprep.subr.bf16.mxu0 0
    %544 = vmatpush1.bf16.msra.mxu0 0
    %545 = vmatprep.subr.bf16.mxu0 0
    %546 = vmatpush1.bf16.msra.mxu0 0
    %547 = vmatprep.subr.bf16.mxu0 0
    %548 = vmatpush1.bf16.msra.mxu0 0
    %549 = vmatprep.subr.bf16.mxu0 0
    %550 = vmatpush1.bf16.msra.mxu0 0
    %551 = vmatprep.subr.bf16.mxu0 0
    %552 = vmatpush1.bf16.msra.mxu0 0
    %553 = vmatprep.subr.bf16.mxu0 0
    %554 = vmatpush1.bf16.msra.mxu0 0
    %555 = vmatprep.subr.bf16.mxu0 0
    %556 = vmatpush1.bf16.msra.mxu0 0
    %557 = vmatprep.subr.bf16.mxu0 0
    %558 = vmatpush1.bf16.msra.mxu0 0
    %559 = vmatprep.mubr.bf16.mxu0 0
    %560 = vmatmul.mubr.bf16.gmra.mrb[0].mxu0 %v478
    %v561 = vpop.f32.mrb[0].mxu0
    %v562 = vadd.f32 %v477, %v561
    %v563 = vpop.f32.mrb[0].mxu0
    %v564 = vpop.f32.mrb[0].mxu0
    %v565 = vpop.f32.mrb[0].mxu0
    %566 = vdwg.mxu0
    %567 = vst [vmem:[#allocation8] sm:$0xff] %v562
    // Predicated region
    $region26: #{tpu_custom_call.1} parent=1 // pred_check
      _
    $region27: #{tpu_custom_call.1} parent=1 // pred_check_branch
      %569 = sbr.rel (0) target = $region29
    $region28: #{tpu_custom_call.1} parent=1 // pred_region
      %s571 = ssub.s32 128, 128
      %572 = vsyncadd [#allocation4], %s571
      %s574 = sshll.u32 [#allocation8], 4
      %s575 = int_to_ptr.vmem [resolvable:$true] %s574
      %577 = dma.vmem_to_hbm [thread:$0]  %s575, 128, %s3, [#allocation4]
    $region29: #{tpu_custom_call.1} parent=1 // pred_fallthru
      _
    // Predicated region
    $region30: #{tpu_custom_call.1} parent=1 // pred_check
      _
    $region31: #{tpu_custom_call.1} parent=1 // pred_check_branch
      %579 = sbr.rel (0) target = $region33
    $region32: #{tpu_custom_call.1} parent=1 // pred_region
      %580 = dma.done [#allocation4], 128
    $region33: #{tpu_custom_call.1} parent=1 // pred_fallthru
      _
    %581 = vsyncpa [#allocation3], 1
    %582 = vsyncpa [#allocation6], 1
    %583 = vsyncpa [#allocation4], 1

</llo_original>
